<compile_context>
chip_gen: v5e
topology: v5e:2x2
jax: 0.10.0
libtpu: 0.0.40
codegen_flags: <defaults>
</compile_context>

<pallas_src>
import jax
import jax.numpy as jnp
from jax.experimental import pallas as pl
from jax.experimental.pallas import tpu as pltpu


# ----------------------------------------------------------------------------
# Kernel: 3 matmuls, 2 ReLUs, 1 bias add. No cross-lane reductions.
# ----------------------------------------------------------------------------
def dueling_dqn_kernel(x_ref, w1_ref, b1_ref, w2_ref, b2_ref, w3_ref, b3_ref,
                       q_ref):
    mm_dtype = w1_ref.dtype  # bf16 matmul operands, f32 accumulate everywhere

    # Cast x on the VPU (plenty of slack under the MXU) instead of in the
    # wrapper — avoids an extra HBM round-trip of x.
    x = x_ref[...].astype(mm_dtype)

    # feature layer: Linear(input_dim, 128) + ReLU
    h1 = jnp.dot(x, w1_ref[...], preferred_element_type=jnp.float32)
    h1 = jnp.maximum(h1 + b1_ref[...], 0.0)

    # fused advantage/value hidden layer: Linear(128, 256) + ReLU
    h2 = jnp.dot(h1.astype(mm_dtype), w2_ref[...],
                 preferred_element_type=jnp.float32)
    h2 = jnp.maximum(h2 + b2_ref[...], 0.0)

    # fused head: centering + value broadcast folded into the weights, so this
    # single matmul directly produces the dueling Q-values.
    q = jnp.dot(h2.astype(mm_dtype), w3_ref[...],
                preferred_element_type=jnp.float32)
    q_ref[...] = (q + b3_ref[...]).astype(q_ref.dtype)


# ----------------------------------------------------------------------------
# Helpers: core count (best effort) and batch-tile selection.
# ----------------------------------------------------------------------------
def _num_tensorcores():
    """Best-effort TensorCores-per-device (v7x = 2, v5e/v6e = 1).

    Only used to pick a grid with enough programs to feed every core; any
    failure falls back to a safe default.
    """
    try:
        info = pltpu.get_tpu_info()
        for attr in ("num_cores", "core_count", "tensorcore_count",
                     "num_tensorcores"):
            n = getattr(info, attr, None)
            if isinstance(n, int) and n > 0:
                return n
    except Exception:
        pass
    try:
        kind = jax.devices()[0].device_kind.lower()
        if "v7" in kind:
            return 2
        if "v5" in kind or "v6" in kind:
            return 1
    except Exception:
        pass
    return 1


def _round_up(x, m):
    return ((x + m - 1) // m) * m


def _choose_batch_tile(B, batch_tile, num_cores):
    if B <= 8:
        return B  # block == full batch dim (layout-legal for any small B)
    batch_tile = max(8, (batch_tile // 8) * 8)
    # Enough programs to (a) feed every TensorCore and (b) cap the tile size.
    n_prog = max(num_cores, -(-B // batch_tile))
    tb = _round_up(-(-B // n_prog), 8)
    return min(tb, _round_up(B, 8))


# ----------------------------------------------------------------------------
# Wrapper: batch grid, weights VMEM-resident, parallel batch axis.
# ----------------------------------------------------------------------------
def dueling_dqn_forward(x, fused, *, batch_tile=4096, out_dtype=jnp.float32,
                        num_cores=None):
    B, input_dim = x.shape
    hidden1 = fused["w1"].shape[1]   # 128
    hidden2 = fused["w2"].shape[1]   # 256
    out_dim = fused["w3"].shape[1]

    if num_cores is None:
        num_cores = _num_tensorcores()

    tb = _choose_batch_tile(B, batch_tile, num_cores)
    grid = (pl.cdiv(B, tb),)

    def resident(shape):
        # Full-array block, constant index -> stays resident in VMEM.
        return pl.BlockSpec(shape, lambda i: (0, 0))

    in_specs = [
        pl.BlockSpec((tb, input_dim), lambda i: (i, 0)),
        resident(fused["w1"].shape), resident(fused["b1"].shape),
        resident(fused["w2"].shape), resident(fused["b2"].shape),
        resident(fused["w3"].shape), resident(fused["b3"].shape),
    ]
    out_spec = pl.BlockSpec((tb, out_dim), lambda i: (i, 0))

    # Working-set estimate: double-buffered x/q tiles + f32 intermediates +
    # resident weights, with 2x headroom.  Ensures big tiles compile on v5e's
    # 16 MiB default scoped limit while staying under v7x's 64 MiB physical.
    itemsize_x = jnp.dtype(x.dtype).itemsize
    itemsize_q = jnp.dtype(out_dtype).itemsize
    w_bytes = sum(int(fused[k].size) * jnp.dtype(fused[k].dtype).itemsize
                  for k in fused)
    tile_bytes = (2 * tb * input_dim * itemsize_x        # x double-buffer
                  + 2 * tb * out_dim * itemsize_q        # q double-buffer
                  + tb * (hidden1 + hidden2 + out_dim) * 4)  # f32 intermediates
    vmem_bytes = int(min(64 * 1024 * 1024,
                         max(2 * (tile_bytes + w_bytes), 16 * 1024 * 1024)))

    flops = 2 * B * (input_dim * hidden1 + hidden1 * hidden2
                     + hidden2 * out_dim)
    bytes_accessed = (B * input_dim * itemsize_x + w_bytes
                      + B * out_dim * itemsize_q)

    return pl.pallas_call(
        dueling_dqn_kernel,
        out_shape=jax.ShapeDtypeStruct((B, out_dim), out_dtype),
        grid=grid,
        in_specs=in_specs,
        out_specs=out_spec,
        compiler_params=pltpu.CompilerParams(
            dimension_semantics=("parallel",),
            vmem_limit_bytes=vmem_bytes),
        cost_estimate=pl.CostEstimate(flops=flops,
                                      transcendentals=0,
                                      bytes_accessed=bytes_accessed),
    )(x, fused["w1"], fused["b1"], fused["w2"], fused["b2"],
      fused["w3"], fused["b3"])


# ----------------------------------------------------------------------------
# Parameter init (PyTorch-style) + param-prep fusion/folding.
# ----------------------------------------------------------------------------
def init_params(key, input_dim, output_dim, hidden=128):
    """Deterministic PyTorch-style (uniform +/- 1/sqrt(fan_in)) init."""
    def linear(k, fan_in, fan_out):
        kw, kb = jax.random.split(k)
        bound = 1.0 / jnp.sqrt(jnp.float32(fan_in))
        w = jax.random.uniform(kw, (fan_in, fan_out), jnp.float32, -bound, bound)
        b = jax.random.uniform(kb, (1, fan_out), jnp.float32, -bound, bound)
        return w, b

    k = jax.random.split(key, 5)
    w_feat, b_feat = linear(k[0], input_dim, hidden)
    w_adv1, b_adv1 = linear(k[1], hidden, hidden)
    w_adv2, b_adv2 = linear(k[2], hidden, output_dim)
    w_val1, b_val1 = linear(k[3], hidden, hidden)
    w_val2, b_val2 = linear(k[4], hidden, 1)
    return dict(
        w_feat=w_feat, b_feat=b_feat,
        w_adv1=w_adv1, b_adv1=b_adv1,
        w_adv2=w_adv2, b_adv2=b_adv2,
        w_val1=w_val1, b_val1=b_val1,
        w_val2=w_val2, b_val2=b_val2,
    )


def prepare_params(p, matmul_dtype=jnp.bfloat16):
    """Fuse adv/val hidden layers, fold mean-centering + value broadcast into
    the head weights, cast matmul operands to bf16 (biases stay f32).

    NOTE: the fold means 'advantage has zero mean' / parity with an f32
    PyTorch checkpoint only holds to bf16 precision (~1e-2 relative).
    """
    out_dim = p["w_adv2"].shape[1]
    center = jnp.eye(out_dim, dtype=jnp.float32) - 1.0 / out_dim  # I - 11^T/n

    w1 = p["w_feat"]                                               # (in, 128)
    b1 = p["b_feat"]                                               # (1, 128)

    w2 = jnp.concatenate([p["w_adv1"], p["w_val1"]], axis=1)       # (128, 256)
    b2 = jnp.concatenate([p["b_adv1"], p["b_val1"]], axis=1)       # (1, 256)

    w_adv2_c = p["w_adv2"] @ center                                # (128, out)
    b_adv2_c = p["b_adv2"] @ center                                # (1, out)
    w_val2_b = jnp.broadcast_to(p["w_val2"], (p["w_val2"].shape[0], out_dim))
    w3 = jnp.concatenate([w_adv2_c, w_val2_b], axis=0)             # (256, out)
    b3 = b_adv2_c + p["b_val2"]                                    # (1, out)

    return dict(
        w1=w1.astype(matmul_dtype), b1=b1.astype(jnp.float32),
        w2=w2.astype(matmul_dtype), b2=b2.astype(jnp.float32),
        w3=w3.astype(matmul_dtype), b3=b3.astype(jnp.float32),
    )


# ----------------------------------------------------------------------------
# References.
# ----------------------------------------------------------------------------
def reference_forward(x, p):
    """Full-f32 PyTorch-semantics reference."""
    feats = jnp.maximum(x @ p["w_feat"] + p["b_feat"], 0.0)
    adv_h = jnp.maximum(feats @ p["w_adv1"] + p["b_adv1"], 0.0)
    adv = adv_h @ p["w_adv2"] + p["b_adv2"]
    val_h = jnp.maximum(feats @ p["w_val1"] + p["b_val1"], 0.0)
    val = val_h @ p["w_val2"] + p["b_val2"]
    return val + (adv - adv.mean(axis=1, keepdims=True))


def fused_reference_forward(x, f):
    """Same math as the kernel (bf16 matmul operands, f32 accumulate)."""
    mm = f["w1"].dtype
    h1 = jnp.maximum(
        jnp.dot(x.astype(mm), f["w1"], preferred_element_type=jnp.float32)
        + f["b1"], 0.0)
    h2 = jnp.maximum(
        jnp.dot(h1.astype(mm), f["w2"], preferred_element_type=jnp.float32)
        + f["b2"], 0.0)
    return jnp.dot(h2.astype(mm), f["w3"],
                   preferred_element_type=jnp.float32) + f["b3"]


if __name__ == "__main__":
    INPUT_DIM, OUTPUT_DIM = 32, 8

    key = jax.random.PRNGKey(0)
    kx, kp, kx2 = jax.random.split(key, 3)
    params = init_params(kp, INPUT_DIM, OUTPUT_DIM)
    fused = prepare_params(params)

    # --- small batch (single grid step) ---------------------------------
    B = 8
    x = jax.random.normal(kx, (B, INPUT_DIM), jnp.float32)
    q = jax.block_until_ready(dueling_dqn_forward(x, fused))
    assert q.shape == (B, OUTPUT_DIM)

    # Exact-path check: same bf16/f32 math as the kernel (tight tolerance).
    q_fused_ref = fused_reference_forward(x, fused)
    assert jnp.allclose(q, q_fused_ref, atol=2e-3, rtol=2e-3)

    # Semantics check vs. the full-f32 reference (bf16 quantization slack).
    q_ref = reference_forward(x, params)
    assert jnp.allclose(q, q_ref, atol=5e-2, rtol=5e-2)

    # --- ragged batch (multi-program grid + padded last tile) ------------
    B2 = 200
    x2 = jax.random.normal(kx2, (B2, INPUT_DIM), jnp.float32)
    q2 = jax.block_until_ready(
        dueling_dqn_forward(x2, fused, batch_tile=4096, num_cores=2))
    assert q2.shape == (B2, OUTPUT_DIM)
    assert jnp.allclose(q2, fused_reference_forward(x2, fused),
                        atol=2e-3, rtol=2e-3)
    assert jnp.allclose(q2, reference_forward(x2, params),
                        atol=5e-2, rtol=5e-2)

    print("KERNEL_OK")
</pallas_src>

<mosaic_0001>
module attributes {stable_mosaic.version = 11 : i64} {
  func.func @dueling_dqn_kernel(%arg0: i32, %arg1: memref<8x32xf32, #tpu.memory_space<vmem>>, %arg2: memref<32x128xbf16, #tpu.memory_space<vmem>>, %arg3: memref<1x128xf32, #tpu.memory_space<vmem>>, %arg4: memref<128x256xbf16, #tpu.memory_space<vmem>>, %arg5: memref<1x256xf32, #tpu.memory_space<vmem>>, %arg6: memref<256x8xbf16, #tpu.memory_space<vmem>>, %arg7: memref<1x8xf32, #tpu.memory_space<vmem>>, %arg8: memref<8x8xf32, #tpu.memory_space<vmem>>) attributes {dimension_semantics = [#tpu.dimension_semantics<parallel>], iteration_bounds = array<i64: 1>, scalar_prefetch = 0 : i64, scratch_operands = 0 : i64, tpu.core_type = #tpu.core_type<tc>, window_params = [{transform_indices = @transform_0, window_bounds = array<i64: 8, 32>}, {pipeline_mode = #tpu.pipeline_mode<synchronous>, transform_indices = @transform_1, window_bounds = array<i64: 32, 128>}, {pipeline_mode = #tpu.pipeline_mode<synchronous>, transform_indices = @transform_2, window_bounds = array<i64: 1, 128>}, {pipeline_mode = #tpu.pipeline_mode<synchronous>, transform_indices = @transform_3, window_bounds = array<i64: 128, 256>}, {pipeline_mode = #tpu.pipeline_mode<synchronous>, transform_indices = @transform_4, window_bounds = array<i64: 1, 256>}, {pipeline_mode = #tpu.pipeline_mode<synchronous>, transform_indices = @transform_5, window_bounds = array<i64: 256, 8>}, {pipeline_mode = #tpu.pipeline_mode<synchronous>, transform_indices = @transform_6, window_bounds = array<i64: 1, 8>}, {transform_indices = @transform_7, window_bounds = array<i64: 8, 8>}]} {
    %c0 = arith.constant 0 : index
    %c0_0 = arith.constant 0 : index
    %0 = vector.load %arg1[%c0, %c0_0] : memref<8x32xf32, #tpu.memory_space<vmem>>, vector<8x32xf32>
    %1 = arith.truncf %0 : vector<8x32xf32> to vector<8x32xbf16>
    %c0_1 = arith.constant 0 : index
    %c0_2 = arith.constant 0 : index
    %2 = vector.load %arg2[%c0_1, %c0_2] : memref<32x128xbf16, #tpu.memory_space<vmem>>, vector<32x128xbf16>
    %cst = arith.constant dense<0.000000e+00> : vector<8x128xf32>
    %3 = tpu.matmul %1, %2, %cst {dimension_numbers = #tpu.dot_dimension_numbers<[1], [0], [0], [1], [0, 0, 1, 1], [], []>} : vector<8x32xbf16>, vector<32x128xbf16>, vector<8x128xf32> -> vector<8x128xf32>
    %c0_3 = arith.constant 0 : index
    %c0_4 = arith.constant 0 : index
    %4 = vector.load %arg3[%c0_3, %c0_4] : memref<1x128xf32, #tpu.memory_space<vmem>>, vector<1x128xf32>
    %5 = vector.broadcast %4 : vector<1x128xf32> to vector<8x128xf32>
    %6 = arith.addf %3, %5 : vector<8x128xf32>
    %cst_5 = arith.constant 0.000000e+00 : f32
    %7 = vector.broadcast %cst_5 : f32 to vector<8x128xf32>
    %8 = arith.maximumf %6, %7 : vector<8x128xf32>
    %9 = arith.truncf %8 : vector<8x128xf32> to vector<8x128xbf16>
    %c0_6 = arith.constant 0 : index
    %c0_7 = arith.constant 0 : index
    %10 = vector.load %arg4[%c0_6, %c0_7] : memref<128x256xbf16, #tpu.memory_space<vmem>>, vector<128x256xbf16>
    %cst_8 = arith.constant dense<0.000000e+00> : vector<8x256xf32>
    %11 = tpu.matmul %9, %10, %cst_8 {dimension_numbers = #tpu.dot_dimension_numbers<[1], [0], [0], [1], [0, 0, 1, 1], [], []>} : vector<8x128xbf16>, vector<128x256xbf16>, vector<8x256xf32> -> vector<8x256xf32>
    %c0_9 = arith.constant 0 : index
    %c0_10 = arith.constant 0 : index
    %12 = vector.load %arg5[%c0_9, %c0_10] : memref<1x256xf32, #tpu.memory_space<vmem>>, vector<1x256xf32>
    %13 = vector.broadcast %12 : vector<1x256xf32> to vector<8x256xf32>
    %14 = arith.addf %11, %13 : vector<8x256xf32>
    %cst_11 = arith.constant 0.000000e+00 : f32
    %15 = vector.broadcast %cst_11 : f32 to vector<8x256xf32>
    %16 = arith.maximumf %14, %15 : vector<8x256xf32>
    %17 = arith.truncf %16 : vector<8x256xf32> to vector<8x256xbf16>
    %c0_12 = arith.constant 0 : index
    %c0_13 = arith.constant 0 : index
    %18 = vector.load %arg6[%c0_12, %c0_13] : memref<256x8xbf16, #tpu.memory_space<vmem>>, vector<256x8xbf16>
    %cst_14 = arith.constant dense<0.000000e+00> : vector<8x8xf32>
    %19 = tpu.matmul %17, %18, %cst_14 {dimension_numbers = #tpu.dot_dimension_numbers<[1], [0], [0], [1], [0, 0, 1, 1], [], []>} : vector<8x256xbf16>, vector<256x8xbf16>, vector<8x8xf32> -> vector<8x8xf32>
    %c0_15 = arith.constant 0 : index
    %c0_16 = arith.constant 0 : index
    %20 = vector.load %arg7[%c0_15, %c0_16] : memref<1x8xf32, #tpu.memory_space<vmem>>, vector<1x8xf32>
    %21 = vector.broadcast %20 : vector<1x8xf32> to vector<8x8xf32>
    %22 = arith.addf %19, %21 : vector<8x8xf32>
    %c0_17 = arith.constant 0 : index
    %c0_18 = arith.constant 0 : index
    %23 = vector.load %arg8[%c0_17, %c0_18] : memref<8x8xf32, #tpu.memory_space<vmem>>, vector<8x8xf32>
    tpu.vector_store %arg8[%c0_17, %c0_18], %22 {strides = array<i32>} : memref<8x8xf32, #tpu.memory_space<vmem>>, vector<8x8xf32>,
    return
  }
  func.func @transform_0(%arg0: i32) -> (i32, i32) {
    %c0_i32 = arith.constant 0 : i32
    %c0_i32_0 = arith.constant 0 : i32
    return %arg0, %c0_i32 : i32, i32
  }
  func.func @transform_1(%arg0: i32) -> (i32, i32) {
    %c0_i32 = arith.constant 0 : i32
    %c0_i32_0 = arith.constant 0 : i32
    %c0_i32_1 = arith.constant 0 : i32
    return %c0_i32, %c0_i32_0 : i32, i32
  }
  func.func @transform_2(%arg0: i32) -> (i32, i32) {
    %c0_i32 = arith.constant 0 : i32
    %c0_i32_0 = arith.constant 0 : i32
    %c0_i32_1 = arith.constant 0 : i32
    return %c0_i32, %c0_i32_0 : i32, i32
  }
  func.func @transform_3(%arg0: i32) -> (i32, i32) {
    %c0_i32 = arith.constant 0 : i32
    %c0_i32_0 = arith.constant 0 : i32
    %c0_i32_1 = arith.constant 0 : i32
    return %c0_i32, %c0_i32_0 : i32, i32
  }
  func.func @transform_4(%arg0: i32) -> (i32, i32) {
    %c0_i32 = arith.constant 0 : i32
    %c0_i32_0 = arith.constant 0 : i32
    %c0_i32_1 = arith.constant 0 : i32
    return %c0_i32, %c0_i32_0 : i32, i32
  }
  func.func @transform_5(%arg0: i32) -> (i32, i32) {
    %c0_i32 = arith.constant 0 : i32
    %c0_i32_0 = arith.constant 0 : i32
    %c0_i32_1 = arith.constant 0 : i32
    return %c0_i32, %c0_i32_0 : i32, i32
  }
  func.func @transform_6(%arg0: i32) -> (i32, i32) {
    %c0_i32 = arith.constant 0 : i32
    %c0_i32_0 = arith.constant 0 : i32
    %c0_i32_1 = arith.constant 0 : i32
    return %c0_i32, %c0_i32_0 : i32, i32
  }
  func.func @transform_7(%arg0: i32) -> (i32, i32) {
    %c0_i32 = arith.constant 0 : i32
    %c0_i32_0 = arith.constant 0 : i32
    return %arg0, %c0_i32 : i32, i32
  }
}

</mosaic_0001>

<llo_original>
// kernel: tpu_custom_call.1
$region0: #{tpu_custom_call.1}
  #allocation0 [shape = 'u32[]', space=smem, size = 0x4, offset = 0x4, fixed_abs, tag = 'smem constant byte address 0x4 - core index']
  #allocation1 [shape = 'u32[72,128]{1,0:T(1,128)}', space=vmem, size = 0x9000, scoped, tag = 'internal scratch']
  %s0 = inlined_call_operand.vmem [shape: f32[8,32], index: 0, kind: input, shape index: {}]
  %s1 = inlined_call_operand.hbm [shape: bf16[32,128], index: 1, kind: input, shape index: {}]
  %s2 = inlined_call_operand.hbm [shape: f32[1,128], index: 2, kind: input, shape index: {}]
  %s3 = inlined_call_operand.vmem [shape: bf16[128,256], index: 3, kind: input, shape index: {}]
  %s4 = inlined_call_operand.vmem [shape: f32[1,256], index: 4, kind: input, shape index: {}]
  %s5 = inlined_call_operand.vmem [shape: bf16[256,8], index: 5, kind: input, shape index: {}]
  %s6 = inlined_call_operand.vmem [shape: f32[1,8], index: 6, kind: input, shape index: {}]
  %s7 = inlined_call_operand.hbm [shape: f32[8,8], index: 7, kind: output, shape index: {}]
  %s8 = sld [smem:[#allocation0]]
  $region46: #{tpu_custom_call.1} parent=0
    _
  %s10 = ssub.s32 1, %s8
  %s11 = scalar_select 0, %s10, %s8
  $region1: #{tpu_custom_call.1} parent=0
    #allocation2 [shape = 'u8[8192]{0}', space=vmem, size = 0x2000, scoped, tag = 'input window, operand 1, single buffered']
    #allocation3 [shape = 's32[1]{0}', space=sflag, size = 0x4, scoped, tag = 'scoped memory for tpu_custom_call.1']
    #allocation4 [shape = 's32[1]{0}', space=sflag, size = 0x4, scoped, tag = 'scoped memory for tpu_custom_call.1']
    #allocation5 [shape = 'u8[512]{0}', space=vmem, size = 0x400, scoped, tag = 'input window, operand 2, single buffered']
    #allocation6 [shape = 's32[1]{0}', space=sflag, size = 0x4, scoped, tag = 'scoped memory for tpu_custom_call.1']
    #allocation7 [shape = 'u8[4096]{0}', space=vmem, size = 0x1000, scoped, tag = 'output window, operand 0, single buffered']
    %12 = vsyncpa [#allocation3], 0
    %13 = vsyncpa [#allocation6], 0
    %14 = vsyncpa [#allocation4], 0
    // Predicated region
    $region2: #{tpu_custom_call.1} parent=1 // pred_check
      _
    $region3: #{tpu_custom_call.1} parent=1 // pred_check_branch
      %16 = sbr.rel (0) target = $region5
    $region4: #{tpu_custom_call.1} parent=1 // pred_region
      _
    $region5: #{tpu_custom_call.1} parent=1 // pred_fallthru
      _
    // Predicated region
    $region6: #{tpu_custom_call.1} parent=1 // pred_check
      _
    $region7: #{tpu_custom_call.1} parent=1 // pred_check_branch
      %18 = sbr.rel (0) target = $region9
    $region8: #{tpu_custom_call.1} parent=1 // pred_region
      %20 = vsyncadd [#allocation3], 0
      %s21 = sshll.u32 %s1, 4
      %s22 = int_to_ptr.hbm [resolvable:$true] %s21
      %s23 = sshll.u32 [#allocation2], 4
      %s24 = int_to_ptr.vmem [resolvable:$true] %s23
      %29 = dma.hbm_to_vmem [thread:$0]  %s22, 256, %s24, [#allocation3], 64, 64, 4
    $region9: #{tpu_custom_call.1} parent=1 // pred_fallthru
      _
    // Predicated region
    $region10: #{tpu_custom_call.1} parent=1 // pred_check
      _
    $region11: #{tpu_custom_call.1} parent=1 // pred_check_branch
      %31 = sbr.rel (0) target = $region13
    $region12: #{tpu_custom_call.1} parent=1 // pred_region
      %33 = vsyncadd [#allocation6], 0
      %s35 = sshll.u32 %s2, 4
      %s36 = int_to_ptr.hbm [resolvable:$true] %s35
      %s37 = sshll.u32 [#allocation5], 4
      %s38 = int_to_ptr.vmem [resolvable:$true] %s37
      %40 = dma.hbm_to_vmem [thread:$0]  %s36, 16, %s38, [#allocation6]
    $region13: #{tpu_custom_call.1} parent=1 // pred_fallthru
      _
    // Predicated region
    $region14: #{tpu_custom_call.1} parent=1 // pred_check
      _
    $region15: #{tpu_custom_call.1} parent=1 // pred_check_branch
      %42 = sbr.rel (0) target = $region17
    $region16: #{tpu_custom_call.1} parent=1 // pred_region
      _
    $region17: #{tpu_custom_call.1} parent=1 // pred_fallthru
      _
    // Predicated region
    $region18: #{tpu_custom_call.1} parent=1 // pred_check
      _
    $region19: #{tpu_custom_call.1} parent=1 // pred_check_branch
      %44 = sbr.rel (0) target = $region21
    $region20: #{tpu_custom_call.1} parent=1 // pred_region
      _
    $region21: #{tpu_custom_call.1} parent=1 // pred_fallthru
      _
    // Predicated region
    $region22: #{tpu_custom_call.1} parent=1 // pred_check
      _
    $region23: #{tpu_custom_call.1} parent=1 // pred_check_branch
      %46 = sbr.rel (0) target = $region25
    $region24: #{tpu_custom_call.1} parent=1 // pred_region
      _
    $region25: #{tpu_custom_call.1} parent=1 // pred_fallthru
      _
    // Predicated region
    $region26: #{tpu_custom_call.1} parent=1 // pred_check
      _
    $region27: #{tpu_custom_call.1} parent=1 // pred_check_branch
      %48 = sbr.rel (0) target = $region29
    $region28: #{tpu_custom_call.1} parent=1 // pred_region
      _
    $region29: #{tpu_custom_call.1} parent=1 // pred_fallthru
      _
    // Predicated region
    $region30: #{tpu_custom_call.1} parent=1 // pred_check
      _
    $region31: #{tpu_custom_call.1} parent=1 // pred_check_branch
      %50 = sbr.rel (0) target = $region33
    $region32: #{tpu_custom_call.1} parent=1 // pred_region
      %52 = dma.done [#allocation3], 256
    $region33: #{tpu_custom_call.1} parent=1 // pred_fallthru
      _
    // Predicated region
    $region34: #{tpu_custom_call.1} parent=1 // pred_check
      _
    $region35: #{tpu_custom_call.1} parent=1 // pred_check_branch
      %54 = sbr.rel (0) target = $region37
    $region36: #{tpu_custom_call.1} parent=1 // pred_region
      %56 = dma.done [#allocation6], 16
    $region37: #{tpu_custom_call.1} parent=1 // pred_fallthru
      _
    %v58 = vld [vmem:[%s0] sm:$0xff]
    %v59 = vpack.c.bf16 %v58, %v58
    %v60 = vld [vmem:[#allocation2] sm:$0xf]
    %v61 = vld [vmem:[#allocation2 + $0x4] sm:$0xf]
    %v62 = vld [vmem:[#allocation2 + $0x8] sm:$0xf]
    %v63 = vld [vmem:[#allocation2 + $0xc] sm:$0xf]
    %v64 = vld [vmem:[#allocation5] sm:$0x1]
    %v66 = vperm.slane %v64, 0
    %v72 = vunpack.c.l.b16 %v60
    %v73 = vunpack.c.l.b16 %v61
    %v74 = vunpack.c.l.b16 %v62
    %v75 = vunpack.c.l.b16 %v63
    %v76 = vpack.c.b16 %v73, %v72
    %v77 = vpack.c.b16 %v75, %v74
    %vm80 = vcmask 261120
    %v82 = vsel %vm80, %v59, 0
    %84 = vmatpush.bf16.msra.mxu0 0
    %85 = vmatpush.bf16.msra.mxu0 0
    %86 = vmatpush.bf16.msra.mxu0 0
    %87 = vmatpush.bf16.msra.mxu0 0
    %88 = vmatpush.bf16.msra.mxu0 0
    %89 = vmatpush.bf16.msra.mxu0 0
    %90 = vmatpush.bf16.msra.mxu0 %v77
    %91 = vmatpush.bf16.msra.mxu0 %v76
    %92 = vmatmul.bf16.gmra.mxu0 %v82
    %v93 = vpop.f32.mrf.mxu0
    %v94 = vadd.f32 %v66, %v93
    %v95 = vpop.f32.mrf.mxu0
    %96 = vdwg.mxu0
    %v97 = vmax.f32 %v94, 0.0
    %v98 = vpack.c.bf16 %v97, %v97
    %v99 = vld [vmem:[%s3] sm:$0xff]
    %v100 = vld [vmem:[%s3 + $0x8] sm:$0xff]
    %v101 = vld [vmem:[%s3 + $0x10] sm:$0xff]
    %v102 = vld [vmem:[%s3 + $0x18] sm:$0xff]
    %v103 = vld [vmem:[%s3 + $0x20] sm:$0xff]
    %v104 = vld [vmem:[%s3 + $0x28] sm:$0xff]
    %v105 = vld [vmem:[%s3 + $0x30] sm:$0xff]
    %v106 = vld [vmem:[%s3 + $0x38] sm:$0xff]
    %v107 = vld [vmem:[%s3 + $0x40] sm:$0xff]
    %v108 = vld [vmem:[%s3 + $0x48] sm:$0xff]
    %v109 = vld [vmem:[%s3 + $0x50] sm:$0xff]
    %v110 = vld [vmem:[%s3 + $0x58] sm:$0xff]
    %v111 = vld [vmem:[%s3 + $0x60] sm:$0xff]
    %v112 = vld [vmem:[%s3 + $0x68] sm:$0xff]
    %v113 = vld [vmem:[%s3 + $0x70] sm:$0xff]
    %v114 = vld [vmem:[%s3 + $0x78] sm:$0xff]
    %v115 = vld [vmem:[%s4] sm:$0x3]
    %v117 = vperm.slane %v115, 0
    %v118 = vperm.slane %v115, 1
    %v137 = vunpack.c.l.b16 %v99
    %v138 = vunpack.c.h.b16 %v99
    %v139 = vunpack.c.l.b16 %v100
    %v140 = vunpack.c.h.b16 %v100
    %v141 = vunpack.c.l.b16 %v101
    %v142 = vunpack.c.h.b16 %v101
    %v143 = vunpack.c.l.b16 %v102
    %v144 = vunpack.c.h.b16 %v102
    %v145 = vunpack.c.l.b16 %v103
    %v146 = vunpack.c.h.b16 %v103
    %v147 = vunpack.c.l.b16 %v104
    %v148 = vunpack.c.h.b16 %v104
    %v149 = vunpack.c.l.b16 %v105
    %v150 = vunpack.c.h.b16 %v105
    %v151 = vunpack.c.l.b16 %v106
    %v152 = vunpack.c.h.b16 %v106
    %v153 = vunpack.c.l.b16 %v107
    %v154 = vunpack.c.h.b16 %v107
    %v155 = vunpack.c.l.b16 %v108
    %v156 = vunpack.c.h.b16 %v108
    %v157 = vunpack.c.l.b16 %v109
    %v158 = vunpack.c.h.b16 %v109
    %v159 = vunpack.c.l.b16 %v110
    %v160 = vunpack.c.h.b16 %v110
    %v161 = vunpack.c.l.b16 %v111
    %v162 = vunpack.c.h.b16 %v111
    %v163 = vunpack.c.l.b16 %v112
    %v164 = vunpack.c.h.b16 %v112
    %v165 = vunpack.c.l.b16 %v113
    %v166 = vunpack.c.h.b16 %v113
    %v167 = vunpack.c.l.b16 %v114
    %v168 = vunpack.c.h.b16 %v114
    %v169 = vpack.c.b16 %v139, %v137
    %v170 = vpack.c.b16 %v140, %v138
    %v171 = vpack.c.b16 %v143, %v141
    %v172 = vpack.c.b16 %v144, %v142
    %v173 = vpack.c.b16 %v147, %v145
    %v174 = vpack.c.b16 %v148, %v146
    %v175 = vpack.c.b16 %v151, %v149
    %v176 = vpack.c.b16 %v152, %v150
    %v177 = vpack.c.b16 %v155, %v153
    %v178 = vpack.c.b16 %v156, %v154
    %v179 = vpack.c.b16 %v159, %v157
    %v180 = vpack.c.b16 %v160, %v158
    %v181 = vpack.c.b16 %v163, %v161
    %v182 = vpack.c.b16 %v164, %v162
    %v183 = vpack.c.b16 %v167, %v165
    %v184 = vpack.c.b16 %v168, %v166
    %201 = vmatpush.bf16.msra.mxu0 %v183
    %202 = vmatpush.bf16.msra.mxu0 %v181
    %203 = vmatpush.bf16.msra.mxu0 %v179
    %204 = vmatpush.bf16.msra.mxu0 %v177
    %205 = vmatpush.bf16.msra.mxu0 %v175
    %206 = vmatpush.bf16.msra.mxu0 %v173
    %207 = vmatpush.bf16.msra.mxu0 %v171
    %208 = vmatpush.bf16.msra.mxu0 %v169
    %209 = vmatmul.bf16.gmra.mxu0 %v98
    %v210 = vpop.f32.mrf.mxu0
    %v211 = vadd.f32 %v117, %v210
    %v212 = vpop.f32.mrf.mxu0
    %213 = vdwg.mxu0
    %214 = vmatpush.bf16.msra.mxu0 %v184
    %215 = vmatpush.bf16.msra.mxu0 %v182
    %216 = vmatpush.bf16.msra.mxu0 %v180
    %217 = vmatpush.bf16.msra.mxu0 %v178
    %218 = vmatpush.bf16.msra.mxu0 %v176
    %219 = vmatpush.bf16.msra.mxu0 %v174
    %220 = vmatpush.bf16.msra.mxu0 %v172
    %221 = vmatpush.bf16.msra.mxu0 %v170
    %222 = vmatmul.bf16.gmra.mxu0 %v98
    %v223 = vpop.f32.mrf.mxu0
    %v224 = vadd.f32 %v118, %v223
    %v225 = vpop.f32.mrf.mxu0
    %226 = vdwg.mxu0
    %v227 = vmax.f32 %v211, 0.0
    %v228 = vmax.f32 %v224, 0.0
    %v229 = vpack.c.bf16 %v227, %v227
    %v230 = vpack.c.bf16 %v228, %v228
    %v231 = vld [vmem:[%s5] sm:$0xf]
    %v232 = vld [vmem:[%s5 + $0x4] sm:$0xf]
    %v233 = vld [vmem:[%s5 + $0x8] sm:$0xf]
    %v234 = vld [vmem:[%s5 + $0xc] sm:$0xf]
    %v235 = vld [vmem:[%s5 + $0x10] sm:$0xf]
    %v236 = vld [vmem:[%s5 + $0x14] sm:$0xf]
    %v237 = vld [vmem:[%s5 + $0x18] sm:$0xf]
    %v238 = vld [vmem:[%s5 + $0x1c] sm:$0xf]
    %v239 = vld [vmem:[%s5 + $0x20] sm:$0xf]
    %v240 = vld [vmem:[%s5 + $0x24] sm:$0xf]
    %v241 = vld [vmem:[%s5 + $0x28] sm:$0xf]
    %v242 = vld [vmem:[%s5 + $0x2c] sm:$0xf]
    %v243 = vld [vmem:[%s5 + $0x30] sm:$0xf]
    %v244 = vld [vmem:[%s5 + $0x34] sm:$0xf]
    %v245 = vld [vmem:[%s5 + $0x38] sm:$0xf]
    %v246 = vld [vmem:[%s5 + $0x3c] sm:$0xf]
    %v247 = vld [vmem:[%s5 + $0x40] sm:$0xf]
    %v248 = vld [vmem:[%s5 + $0x44] sm:$0xf]
    %v249 = vld [vmem:[%s5 + $0x48] sm:$0xf]
    %v250 = vld [vmem:[%s5 + $0x4c] sm:$0xf]
    %v251 = vld [vmem:[%s5 + $0x50] sm:$0xf]
    %v252 = vld [vmem:[%s5 + $0x54] sm:$0xf]
    %v253 = vld [vmem:[%s5 + $0x58] sm:$0xf]
    %v254 = vld [vmem:[%s5 + $0x5c] sm:$0xf]
    %v255 = vld [vmem:[%s5 + $0x60] sm:$0xf]
    %v256 = vld [vmem:[%s5 + $0x64] sm:$0xf]
    %v257 = vld [vmem:[%s5 + $0x68] sm:$0xf]
    %v258 = vld [vmem:[%s5 + $0x6c] sm:$0xf]
    %v259 = vld [vmem:[%s5 + $0x70] sm:$0xf]
    %v260 = vld [vmem:[%s5 + $0x74] sm:$0xf]
    %v261 = vld [vmem:[%s5 + $0x78] sm:$0xf]
    %v262 = vld [vmem:[%s5 + $0x7c] sm:$0xf]
    %v263 = vld [vmem:[%s6] sm:$0x1]
    %v265 = vperm.slane %v263, 0
    %v299 = vunpack.c.l.b16 %v231
    %v300 = vunpack.c.l.b16 %v232
    %v301 = vunpack.c.l.b16 %v233
    %v302 = vunpack.c.l.b16 %v234
    %v303 = vunpack.c.l.b16 %v235
    %v304 = vunpack.c.l.b16 %v236
    %v305 = vunpack.c.l.b16 %v237
    %v306 = vunpack.c.l.b16 %v238
    %v307 = vunpack.c.l.b16 %v239
    %v308 = vunpack.c.l.b16 %v240
    %v309 = vunpack.c.l.b16 %v241
    %v310 = vunpack.c.l.b16 %v242
    %v311 = vunpack.c.l.b16 %v243
    %v312 = vunpack.c.l.b16 %v244
    %v313 = vunpack.c.l.b16 %v245
    %v314 = vunpack.c.l.b16 %v246
    %v315 = vunpack.c.l.b16 %v247
    %v316 = vunpack.c.l.b16 %v248
    %v317 = vunpack.c.l.b16 %v249
    %v318 = vunpack.c.l.b16 %v250
    %v319 = vunpack.c.l.b16 %v251
    %v320 = vunpack.c.l.b16 %v252
    %v321 = vunpack.c.l.b16 %v253
    %v322 = vunpack.c.l.b16 %v254
    %v323 = vunpack.c.l.b16 %v255
    %v324 = vunpack.c.l.b16 %v256
    %v325 = vunpack.c.l.b16 %v257
    %v326 = vunpack.c.l.b16 %v258
    %v327 = vunpack.c.l.b16 %v259
    %v328 = vunpack.c.l.b16 %v260
    %v329 = vunpack.c.l.b16 %v261
    %v330 = vunpack.c.l.b16 %v262
    %v331 = vpack.c.b16 %v300, %v299
    %v332 = vpack.c.b16 %v302, %v301
    %v333 = vpack.c.b16 %v304, %v303
    %v334 = vpack.c.b16 %v306, %v305
    %v335 = vpack.c.b16 %v308, %v307
    %v336 = vpack.c.b16 %v310, %v309
    %v337 = vpack.c.b16 %v312, %v311
    %v338 = vpack.c.b16 %v314, %v313
    %v339 = vpack.c.b16 %v316, %v315
    %v340 = vpack.c.b16 %v318, %v317
    %v341 = vpack.c.b16 %v320, %v319
    %v342 = vpack.c.b16 %v322, %v321
    %v343 = vpack.c.b16 %v324, %v323
    %v344 = vpack.c.b16 %v326, %v325
    %v345 = vpack.c.b16 %v328, %v327
    %v346 = vpack.c.b16 %v330, %v329
    %363 = vmatpush.bf16.msra.mxu0 %v338
    %364 = vmatpush.bf16.msra.mxu0 %v337
    %365 = vmatpush.bf16.msra.mxu0 %v336
    %366 = vmatpush.bf16.msra.mxu0 %v335
    %367 = vmatpush.bf16.msra.mxu0 %v334
    %368 = vmatpush.bf16.msra.mxu0 %v333
    %369 = vmatpush.bf16.msra.mxu0 %v332
    %370 = vmatpush.bf16.msra.mxu0 %v331
    %371 = vmatmul.bf16.gmra.mxu0 %v229
    %v372 = vpop.f32.mrf.mxu0
    %v373 = vadd.f32 %v265, %v372
    %v374 = vpop.f32.mrf.mxu0
    %375 = vdwg.mxu0
    %376 = vmatpush.bf16.msra.mxu0 %v346
    %377 = vmatpush.bf16.msra.mxu0 %v345
    %378 = vmatpush.bf16.msra.mxu0 %v344
    %379 = vmatpush.bf16.msra.mxu0 %v343
    %380 = vmatpush.bf16.msra.mxu0 %v342
    %381 = vmatpush.bf16.msra.mxu0 %v341
    %382 = vmatpush.bf16.msra.mxu0 %v340
    %383 = vmatpush.bf16.msra.mxu0 %v339
    %384 = vmatmul.bf16.gmra.mxu0 %v230
    %v385 = vpop.f32.mrf.mxu0
    %v386 = vadd.f32 %v373, %v385
    %v387 = vpop.f32.mrf.mxu0
    %388 = vdwg.mxu0
    %vm389 = vcmask 64512
    %390 = vst.msk [vmem:[#allocation7] sm:$0xff] %vm389, %v386
    // Predicated region
    $region38: #{tpu_custom_call.1} parent=1 // pred_check
      _
    $region39: #{tpu_custom_call.1} parent=1 // pred_check_branch
      %392 = sbr.rel (0) target = $region41
    $region40: #{tpu_custom_call.1} parent=1 // pred_region
      %394 = vsyncadd [#allocation4], 0
      %s396 = sshll.u32 [#allocation7], 4
      %s397 = int_to_ptr.vmem [resolvable:$true] %s396
      %s398 = sshll.u32 %s7, 4
      %s399 = int_to_ptr.hbm [resolvable:$true] %s398
      %401 = dma.vmem_to_hbm [thread:$0]  %s397, 128, %s399, [#allocation4]
    $region41: #{tpu_custom_call.1} parent=1 // pred_fallthru
      _
    // Predicated region
    $region42: #{tpu_custom_call.1} parent=1 // pred_check
      _
    $region43: #{tpu_custom_call.1} parent=1 // pred_check_branch
      %403 = sbr.rel (0) target = $region45
    $region44: #{tpu_custom_call.1} parent=1 // pred_region
      %405 = dma.done [#allocation4], 128
    $region45: #{tpu_custom_call.1} parent=1 // pred_fallthru
      _
    %406 = vsyncpa [#allocation3], 1
    %407 = vsyncpa [#allocation6], 1
    %408 = vsyncpa [#allocation4], 1

</llo_original>
